<compile_context>
chip_gen: v7x
topology: tpu7x:2x2x1
jax: 0.10.0
libtpu: 0.0.40
codegen_flags: <defaults>
</compile_context>

<pallas_src>
import functools

import jax
import jax.numpy as jnp
from jax import lax
from jax.experimental import pallas as pl
from jax.experimental.pallas import tpu as pltpu

LANE = 128
SUBLANE = 8


def _round_up(n, m):
    return (n + m - 1) // m * m


# --------------------------------------------------------------------------
# Kernel: whole (time-blocked) recurrence, hidden carried in VMEM scratch
# --------------------------------------------------------------------------
def rnn_seq_kernel(x_ref, h0_ref, wx_ref, wh_ref, b_ref, out_ref, h_scratch,
                   *, hidden_size, output_size, cast_bf16):
    """One grid step = TB timesteps of the recurrence for one batch tile.

    x_ref:  (TB, Bt, I)   chunk of inputs
    h0_ref: (Bt, P)       initial hidden (lane-padded, resident per batch tile)
    wx_ref: (I, P)        x-part of fused weight (resident)
    wh_ref: (P, P)        h-part of fused weight, rows [H:P) are ZERO (resident)
    b_ref:  (1, P)        fused bias (resident)
    out_ref:(TB, Bt, P)   per-step fused result: cols [0:H) hidden (pre-act),
                          cols [H:H+O) sigmoid(output), rest padding
    h_scratch: (Bt, P)    carried hidden, persists across grid steps
    """
    # Reset the carried hidden at the first time-block of each batch tile.
    @pl.when(pl.program_id(1) == 0)
    def _():
        h_scratch[...] = h0_ref[...]

    TB, Bt, I = x_ref.shape
    P = wh_ref.shape[1]

    # Hoisted x-projection (+ bias) for the whole chunk: one large-M matmul.
    x2d = x_ref[...].reshape(TB * Bt, I)
    if cast_bf16:
        x2d = x2d.astype(jnp.bfloat16)
    xproj = jnp.dot(x2d, wx_ref[...], preferred_element_type=jnp.float32)
    xproj = xproj + b_ref[...]
    # The output VMEM block doubles as the xproj scratch.
    out_ref[...] = xproj.reshape(TB, Bt, P)

    # Loop-invariant output-head mask, computed once per chunk.
    col = lax.broadcasted_iota(jnp.int32, (Bt, P), 1)
    is_out = (col >= hidden_size) & (col < hidden_size + output_size)

    # Serial recurrence over the chunk: only h @ Wh is on the critical path.
    def step(t, h):
        h_op = h.astype(jnp.bfloat16) if cast_bf16 else h
        acc = out_ref[t] + jnp.dot(h_op, wh_ref[...],
                                   preferred_element_type=jnp.float32)
        out_ref[t] = jnp.where(is_out, jax.nn.sigmoid(acc), acc)
        return acc  # full-lane (Bt, P) carry; padded cols inert (zero Wh rows)

    h_scratch[...] = lax.fori_loop(0, TB, step, h_scratch[...])


# --------------------------------------------------------------------------
# Param packing (torch Linear layout -> fused kernel layout)
# --------------------------------------------------------------------------
def pack_params(wh, bh, wo, bo, input_size):
    """wh: (H, C), bh: (H,), wo: (O, C), bo: (O,)  ->  (wx, wh_full, b_fused).

    Fused transposed weight (C, H+O) is zero-padded to (C, P) columns, split
    by rows into the x-part (first I rows) and the h-part (remaining H rows);
    the h-part is further zero-padded to (P, P) rows so the carried hidden can
    be a full 128-lane slab (the zero rows make the padded columns inert).
    """
    H, C = wh.shape
    O = wo.shape[0]
    assert C == input_size + H
    P = _round_up(H + O, LANE)

    w_fused_t = jnp.concatenate([wh.T, wo.T], axis=1)            # (C, H+O)
    w_fused_t = jnp.pad(w_fused_t, ((0, 0), (0, P - (H + O))))   # (C, P)
    b_fused = jnp.concatenate([bh, bo], axis=0)
    b_fused = jnp.pad(b_fused, (0, P - (H + O))).reshape(1, P)

    wx = w_fused_t[:input_size]                                  # (I, P)
    wh_rows = w_fused_t[input_size:]                             # (H, P)
    wh_full = jnp.pad(wh_rows, ((0, P - H), (0, 0)))             # (P, P), rows H..P ZERO
    return wx, wh_full, b_fused


# --------------------------------------------------------------------------
# pallas_call wrapper
# --------------------------------------------------------------------------
@functools.partial(jax.jit, static_argnames=("hidden_size", "output_size",
                                             "t_block", "batch_block",
                                             "cast_bf16"))
def _rnn_seq_call(xs3, h2d, wx, wh_full, b_fused, *, hidden_size, output_size,
                  t_block, batch_block, cast_bf16):
    Tp, Bp, I = xs3.shape
    P = b_fused.shape[1]
    TB, Bt = t_block, batch_block
    nt, nb = Tp // TB, Bp // Bt

    kernel = functools.partial(rnn_seq_kernel,
                               hidden_size=hidden_size,
                               output_size=output_size,
                               cast_bf16=cast_bf16)
    # VMEM budget (f32): 2*(TB*Bt*(I+P)) double-buffered blocks + weights
    # ((I+P+1)*P) + (Bt, P) scratch — ~2-3 MiB at TB=128, well inside the
    # 16/32 MiB scoped defaults of v5e / v6e / v7x.
    return pl.pallas_call(
        kernel,
        out_shape=jax.ShapeDtypeStruct((Tp, Bp, P), jnp.float32),
        grid=(nb, nt),
        in_specs=[
            pl.BlockSpec((TB, Bt, I), lambda b, t: (t, b, 0)),   # x chunk
            pl.BlockSpec((Bt, P), lambda b, t: (b, 0)),          # h0 (per batch tile)
            pl.BlockSpec((I, P), lambda b, t: (0, 0)),           # wx (resident)
            pl.BlockSpec((P, P), lambda b, t: (0, 0)),           # wh (resident)
            pl.BlockSpec((1, P), lambda b, t: (0, 0)),           # bias (resident)
        ],
        out_specs=pl.BlockSpec((TB, Bt, P), lambda b, t: (t, b, 0)),
        scratch_shapes=[pltpu.VMEM((Bt, P), jnp.float32)],
        compiler_params=pltpu.CompilerParams(
            dimension_semantics=("parallel", "arbitrary")),
    )(xs3, h2d, wx, wh_full, b_fused)


# --------------------------------------------------------------------------
# Public wrappers
# --------------------------------------------------------------------------
def rnn_sequence_forward(xs, hidden_state, packed_params, *, output_size,
                         t_block=128, batch_block=256, use_bf16=False):
    """Run the RNN cell over a whole sequence inside ONE pallas_call.

    xs: (T, I) or (T, B, I);  hidden_state: (H,) or (B, H).
    Returns (outputs, final_hidden) with outputs (T, [B,] O).
    """
    wx, wh_full, b_fused = packed_params
    H = hidden_state.shape[-1]
    O = output_size
    P = wh_full.shape[1]

    squeeze = (xs.ndim == 2)
    xs3 = xs[:, None, :] if squeeze else xs
    h2d = hidden_state.reshape(1, -1) if squeeze else hidden_state

    T, B, I = xs3.shape

    # Batch tiling (parallel grid axis — shards across v7x's two TCs when big).
    Bt = min(batch_block, _round_up(B, SUBLANE))
    Bp = _round_up(B, Bt)
    # Time blocking (amortizes grid-step + DMA fixed costs).
    TB = min(t_block, T)
    Tp = _round_up(T, TB)

    if Bp != B:
        xs3 = jnp.pad(xs3, ((0, 0), (0, Bp - B), (0, 0)))
        h2d = jnp.pad(h2d, ((0, Bp - B), (0, 0)))
    if Tp != T:
        xs3 = jnp.pad(xs3, ((0, Tp - T), (0, 0), (0, 0)))
    # Pad the carried hidden to full lane width; extra cols are inert because
    # the matching wh_full rows are zero (invariant kept by pack_params).
    h2d = jnp.pad(h2d, ((0, 0), (0, P - H)))

    if use_bf16:
        wx = wx.astype(jnp.bfloat16)
        wh_full = wh_full.astype(jnp.bfloat16)

    fused = _rnn_seq_call(xs3, h2d, wx, wh_full, b_fused,
                          hidden_size=H, output_size=O,
                          t_block=TB, batch_block=Bt, cast_bf16=use_bf16)

    outputs = fused[:T, :B, H:H + O]
    final_hidden = fused[T - 1, :B, :H]
    if squeeze:
        outputs = outputs.reshape(T, O)
        final_hidden = final_hidden.reshape(H)
    return outputs, final_hidden


def rnn_forward(x, hidden_state, packed_params, *, output_size, use_bf16=False):
    """Matches RNN.forward: returns (output, hidden).

    x: (I,) or (B, I);  hidden_state: (H,) or (B, H).
    """
    outs, hidden = rnn_sequence_forward(x[None], hidden_state, packed_params,
                                        output_size=output_size,
                                        use_bf16=use_bf16)
    return outs[0], hidden


# --------------------------------------------------------------------------
# Init (nn.Linear-style, torch layout) + self-test
# --------------------------------------------------------------------------
def init_params(key, input_size, hidden_size, output_size):
    C = input_size + hidden_size
    k1, k2, k3, k4 = jax.random.split(key, 4)
    bound = 1.0 / jnp.sqrt(C)
    wh = jax.random.uniform(k1, (hidden_size, C), jnp.float32, -bound, bound)
    bh = jax.random.uniform(k2, (hidden_size,), jnp.float32, -bound, bound)
    wo = jax.random.uniform(k3, (output_size, C), jnp.float32, -bound, bound)
    bo = jax.random.uniform(k4, (output_size,), jnp.float32, -bound, bound)
    return wh, bh, wo, bo


if __name__ == "__main__":
    input_size, hidden_size, output_size = 32, 32, 16

    key = jax.random.PRNGKey(0)
    kp, kx, kh, ks = jax.random.split(key, 4)

    wh, bh, wo, bo = init_params(kp, input_size, hidden_size, output_size)
    packed = pack_params(wh, bh, wo, bo, input_size)

    # ---- single step (exact module semantics) ----
    x = jax.random.normal(kx, (input_size,), jnp.float32)
    hidden_state = jax.random.normal(kh, (hidden_size,), jnp.float32)

    output, hidden = rnn_forward(x, hidden_state, packed,
                                 output_size=output_size)
    jax.block_until_ready((output, hidden))

    combined = jnp.concatenate([x, hidden_state], axis=0)
    ref_hidden = combined @ wh.T + bh
    ref_output = jax.nn.sigmoid(combined @ wo.T + bo)
    assert jnp.allclose(output, ref_output, atol=1e-5, rtol=1e-5)
    assert jnp.allclose(hidden, ref_hidden, atol=1e-5, rtol=1e-5)

    # ---- whole sequence in one kernel (time-blocked, f32) ----
    T = 8
    xs = jax.random.normal(ks, (T, input_size), jnp.float32)
    outs, h_final = rnn_sequence_forward(xs, hidden_state, packed,
                                         output_size=output_size)
    jax.block_until_ready((outs, h_final))

    def ref_step(h, x_t):
        comb = jnp.concatenate([x_t, h], axis=-1)
        return comb @ wh.T + bh, jax.nn.sigmoid(comb @ wo.T + bo)

    ref_h_final, ref_outs = lax.scan(ref_step, hidden_state, xs)
    assert jnp.allclose(outs, ref_outs, atol=1e-4, rtol=1e-4)
    assert jnp.allclose(h_final, ref_h_final, atol=1e-4, rtol=1e-4)

    # ---- batched sequence, T not divisible by the time block ----
    T2, B2 = 37, 5
    xs_b = jax.random.normal(ks, (T2, B2, input_size), jnp.float32)
    h0_b = jax.random.normal(kh, (B2, hidden_size), jnp.float32)
    outs_b, hf_b = rnn_sequence_forward(xs_b, h0_b, packed,
                                        output_size=output_size, t_block=16)
    jax.block_until_ready((outs_b, hf_b))
    ref_hf_b, ref_outs_b = lax.scan(ref_step, h0_b, xs_b)
    assert jnp.allclose(outs_b, ref_outs_b, atol=1e-4, rtol=1e-4)
    assert jnp.allclose(hf_b, ref_hf_b, atol=1e-4, rtol=1e-4)

    # ---- bf16 MXU-operand path (v6e/v7x), f32 carry/accumulator ----
    outs16, hf16 = rnn_sequence_forward(xs, hidden_state, packed,
                                        output_size=output_size, use_bf16=True)
    jax.block_until_ready((outs16, hf16))
    assert jnp.allclose(outs16, ref_outs, atol=1e-1)
    assert jnp.allclose(hf16, ref_h_final, atol=1e-1)

    print("KERNEL_OK")
</pallas_src>

<mosaic_0001>
module attributes {stable_mosaic.version = 11 : i64} {
  func.func @rnn_seq_kernel(%arg0: i32, %arg1: i32, %arg2: memref<1x8x32xf32, #tpu.memory_space<vmem>>, %arg3: memref<8x128xf32, #tpu.memory_space<vmem>>, %arg4: memref<32x128xf32, #tpu.memory_space<vmem>>, %arg5: memref<128x128xf32, #tpu.memory_space<vmem>>, %arg6: memref<1x128xf32, #tpu.memory_space<vmem>>, %arg7: memref<1x8x128xf32, #tpu.memory_space<vmem>>, %arg8: memref<8x128xf32, #tpu.memory_space<vmem>>) attributes {dimension_semantics = [#tpu.dimension_semantics<parallel>, #tpu.dimension_semantics<arbitrary>], iteration_bounds = array<i64: 1, 1>, scalar_prefetch = 0 : i64, scratch_operands = 1 : i64, tpu.core_type = #tpu.core_type<tc>, window_params = [{transform_indices = @transform_0, window_bounds = array<i64: 1, 8, 32>}, {transform_indices = @transform_1, window_bounds = array<i64: 8, 128>}, {pipeline_mode = #tpu.pipeline_mode<synchronous>, transform_indices = @transform_2, window_bounds = array<i64: 32, 128>}, {pipeline_mode = #tpu.pipeline_mode<synchronous>, transform_indices = @transform_3, window_bounds = array<i64: 128, 128>}, {pipeline_mode = #tpu.pipeline_mode<synchronous>, transform_indices = @transform_4, window_bounds = array<i64: 1, 128>}, {transform_indices = @transform_5, window_bounds = array<i64: 1, 8, 128>}]} {
    %c0_i32 = arith.constant 0 : i32
    %0 = arith.cmpi eq, %arg1, %c0_i32 : i32
    %1 = arith.extui %0 : i1 to i32
    %c0_i32_0 = arith.constant 0 : i32
    %2 = arith.cmpi ne, %1, %c0_i32_0 : i32
    scf.if %2 {
      %c0_23 = arith.constant 0 : index
      %c0_24 = arith.constant 0 : index
      %36 = vector.load %arg3[%c0_23, %c0_24] : memref<8x128xf32, #tpu.memory_space<vmem>>, vector<8x128xf32>
      %c0_25 = arith.constant 0 : index
      %c0_26 = arith.constant 0 : index
      %37 = vector.load %arg8[%c0_25, %c0_26] : memref<8x128xf32, #tpu.memory_space<vmem>>, vector<8x128xf32>
      tpu.vector_store %arg8[%c0_25, %c0_26], %36 {strides = array<i32>} : memref<8x128xf32, #tpu.memory_space<vmem>>, vector<8x128xf32>,
    } else {
    }
    %c0 = arith.constant 0 : index
    %c0_1 = arith.constant 0 : index
    %c0_2 = arith.constant 0 : index
    %3 = vector.load %arg2[%c0, %c0_1, %c0_2] : memref<1x8x32xf32, #tpu.memory_space<vmem>>, vector<1x8x32xf32>
    %4 = vector.shape_cast %3 : vector<1x8x32xf32> to vector<8x32xf32>
    %c0_3 = arith.constant 0 : index
    %c0_4 = arith.constant 0 : index
    %5 = vector.load %arg4[%c0_3, %c0_4] : memref<32x128xf32, #tpu.memory_space<vmem>>, vector<32x128xf32>
    %cst = arith.constant dense<0.000000e+00> : vector<8x128xf32>
    %6 = tpu.matmul %4, %5, %cst {dimension_numbers = #tpu.dot_dimension_numbers<[1], [0], [0], [1], [0, 0, 1, 1], [], []>} : vector<8x32xf32>, vector<32x128xf32>, vector<8x128xf32> -> vector<8x128xf32>
    %c0_5 = arith.constant 0 : index
    %c0_6 = arith.constant 0 : index
    %7 = vector.load %arg6[%c0_5, %c0_6] : memref<1x128xf32, #tpu.memory_space<vmem>>, vector<1x128xf32>
    %8 = vector.broadcast %7 : vector<1x128xf32> to vector<8x128xf32>
    %9 = arith.addf %6, %8 : vector<8x128xf32>
    %10 = vector.shape_cast %9 : vector<8x128xf32> to vector<1x8x128xf32>
    %c0_7 = arith.constant 0 : index
    %c0_8 = arith.constant 0 : index
    %c0_9 = arith.constant 0 : index
    %11 = vector.load %arg7[%c0_7, %c0_8, %c0_9] : memref<1x8x128xf32, #tpu.memory_space<vmem>>, vector<1x8x128xf32>
    tpu.vector_store %arg7[%c0_7, %c0_8, %c0_9], %10 {strides = array<i32>} : memref<1x8x128xf32, #tpu.memory_space<vmem>>, vector<1x8x128xf32>,
    %12 = tpu.iota {dimensions = array<i32: 1>} : vector<8x128xi32>
    %c32_i32 = arith.constant 32 : i32
    %13 = vector.broadcast %c32_i32 : i32 to vector<8x128xi32>
    %14 = arith.cmpi sge, %12, %13 : vector<8x128xi32>
    %c48_i32 = arith.constant 48 : i32
    %15 = vector.broadcast %c48_i32 : i32 to vector<8x128xi32>
    %16 = arith.cmpi slt, %12, %15 : vector<8x128xi32>
    %17 = arith.andi %14, %16 : vector<8x128xi1>
    %c0_10 = arith.constant 0 : index
    %c0_11 = arith.constant 0 : index
    %18 = vector.load %arg8[%c0_10, %c0_11] : memref<8x128xf32, #tpu.memory_space<vmem>>, vector<8x128xf32>
    %c0_i32_12 = arith.constant 0 : i32
    %19 = arith.index_cast %c0_i32_12 : i32 to index
    %c0_13 = arith.constant 0 : index
    %c0_14 = arith.constant 0 : index
    %20 = vector.load %arg7[%19, %c0_13, %c0_14] : memref<1x8x128xf32, #tpu.memory_space<vmem>>, vector<1x8x128xf32>
    %21 = vector.shape_cast %20 : vector<1x8x128xf32> to vector<8x128xf32>
    %c0_15 = arith.constant 0 : index
    %c0_16 = arith.constant 0 : index
    %22 = vector.load %arg5[%c0_15, %c0_16] : memref<128x128xf32, #tpu.memory_space<vmem>>, vector<128x128xf32>
    %cst_17 = arith.constant dense<0.000000e+00> : vector<8x128xf32>
    %23 = tpu.matmul %18, %22, %cst_17 {dimension_numbers = #tpu.dot_dimension_numbers<[1], [0], [0], [1], [0, 0, 1, 1], [], []>} : vector<8x128xf32>, vector<128x128xf32>, vector<8x128xf32> -> vector<8x128xf32>
    %24 = arith.addf %21, %23 : vector<8x128xf32>
    %25 = arith.negf %24 : vector<8x128xf32>
    %26 = math.exp %25 : vector<8x128xf32>
    %cst_18 = arith.constant 1.000000e+00 : f32
    %27 = vector.broadcast %cst_18 : f32 to vector<8x128xf32>
    %28 = arith.addf %27, %26 : vector<8x128xf32>
    %29 = arith.divf %27, %28 : vector<8x128xf32>
    %30 = arith.select %17, %29, %24 : vector<8x128xi1>, vector<8x128xf32>
    %31 = arith.index_cast %c0_i32_12 : i32 to index
    %c0_19 = arith.constant 0 : index
    %c0_20 = arith.constant 0 : index
    %32 = vector.load %arg7[%31, %c0_19, %c0_20] : memref<1x8x128xf32, #tpu.memory_space<vmem>>, vector<1x8x128xf32>
    %33 = vector.shape_cast %32 : vector<1x8x128xf32> to vector<8x128xf32>
    %34 = vector.shape_cast %30 : vector<8x128xf32> to vector<1x8x128xf32>
    tpu.vector_store %arg7[%31, %c0_19, %c0_20], %34 {strides = array<i32>} : memref<1x8x128xf32, #tpu.memory_space<vmem>>, vector<1x8x128xf32>,
    %c1_i32 = arith.constant 1 : i32
    %c0_21 = arith.constant 0 : index
    %c0_22 = arith.constant 0 : index
    %35 = vector.load %arg8[%c0_21, %c0_22] : memref<8x128xf32, #tpu.memory_space<vmem>>, vector<8x128xf32>
    tpu.vector_store %arg8[%c0_21, %c0_22], %24 {strides = array<i32>} : memref<8x128xf32, #tpu.memory_space<vmem>>, vector<8x128xf32>,
    return
  }
  func.func @transform_0(%arg0: i32, %arg1: i32) -> (i32, i32, i32) {
    %c0_i32 = arith.constant 0 : i32
    %c0_i32_0 = arith.constant 0 : i32
    return %arg1, %arg0, %c0_i32 : i32, i32, i32
  }
  func.func @transform_1(%arg0: i32, %arg1: i32) -> (i32, i32) {
    %c0_i32 = arith.constant 0 : i32
    %c0_i32_0 = arith.constant 0 : i32
    return %arg0, %c0_i32 : i32, i32
  }
  func.func @transform_2(%arg0: i32, %arg1: i32) -> (i32, i32) {
    %c0_i32 = arith.constant 0 : i32
    %c0_i32_0 = arith.constant 0 : i32
    %c0_i32_1 = arith.constant 0 : i32
    return %c0_i32, %c0_i32_0 : i32, i32
  }
  func.func @transform_3(%arg0: i32, %arg1: i32) -> (i32, i32) {
    %c0_i32 = arith.constant 0 : i32
    %c0_i32_0 = arith.constant 0 : i32
    %c0_i32_1 = arith.constant 0 : i32
    return %c0_i32, %c0_i32_0 : i32, i32
  }
  func.func @transform_4(%arg0: i32, %arg1: i32) -> (i32, i32) {
    %c0_i32 = arith.constant 0 : i32
    %c0_i32_0 = arith.constant 0 : i32
    %c0_i32_1 = arith.constant 0 : i32
    return %c0_i32, %c0_i32_0 : i32, i32
  }
  func.func @transform_5(%arg0: i32, %arg1: i32) -> (i32, i32, i32) {
    %c0_i32 = arith.constant 0 : i32
    %c0_i32_0 = arith.constant 0 : i32
    return %arg1, %arg0, %c0_i32 : i32, i32, i32
  }
}

</mosaic_0001>

<llo_original>
// kernel: _rnn_seq_call.1
$region0: #{_rnn_seq_call.1}
  #allocation0 [shape = 'u32[]', space=smem, size = 0x4, offset = 0x4, fixed_abs, tag = 'smem constant byte address 0x4 - core index']
  #allocation1 [shape = 'u32[144,128]{1,0:T(1,128)}', space=vmem, size = 0x12000, scoped, tag = 'internal scratch']
  #allocation2 [shape = 'f32[8,128]{1,0:T(8,128)}', space=vmem, size = 0x1000, scoped, tag = 'scratch operand']
  %s0 = inlined_call_operand.hbm [shape: f32[1,8,32], index: 0, kind: input, shape index: {}]
  %s1 = inlined_call_operand.hbm [shape: f32[8,128], index: 1, kind: input, shape index: {}]
  %s2 = inlined_call_operand.hbm [shape: f32[32,128], index: 2, kind: input, shape index: {}]
  %s3 = inlined_call_operand.hbm [shape: f32[128,128], index: 3, kind: input, shape index: {}]
  %s4 = inlined_call_operand.vmem [shape: f32[1,128], index: 4, kind: input, shape index: {}]
  %s5 = inlined_call_operand.hbm [shape: f32[1,8,128], index: 5, kind: output, shape index: {}]
  %s6 = sld [smem:[#allocation0]]
  $region50: #{_rnn_seq_call.1} parent=0
    _
  %s8 = ssub.s32 1, %s6
  %s9 = scalar_select 0, %s8, %s6
  $region1: #{_rnn_seq_call.1} parent=0
    #allocation3 [shape = 'u8[4096]{0}', space=vmem, size = 0x1000, scoped, tag = 'input window, operand 0, single buffered']
    #allocation4 [shape = 's32[1]{0}', space=sflag, size = 0x4, scoped, tag = 'scoped memory for _rnn_seq_call.1']
    #allocation5 [shape = 's32[1]{0}', space=sflag, size = 0x4, scoped, tag = 'scoped memory for _rnn_seq_call.1']
    #allocation6 [shape = 'u8[4096]{0}', space=vmem, size = 0x1000, scoped, tag = 'input window, operand 1, single buffered']
    #allocation7 [shape = 's32[1]{0}', space=sflag, size = 0x4, scoped, tag = 'scoped memory for _rnn_seq_call.1']
    #allocation8 [shape = 'u8[16384]{0}', space=vmem, size = 0x4000, scoped, tag = 'input window, operand 2, single buffered']
    #allocation9 [shape = 'u8[65536]{0}', space=vmem, size = 0x10000, scoped, tag = 'input window, operand 3, single buffered']
    #allocation10 [shape = 's32[1]{0}', space=sflag, size = 0x4, scoped, tag = 'scoped memory for _rnn_seq_call.1']
    #allocation11 [shape = 'u8[4096]{0}', space=vmem, size = 0x1000, scoped, tag = 'output window, operand 0, single buffered']
    %10 = vsyncpa [#allocation4], 0
    %11 = vsyncpa [#allocation7], 0
    %12 = vsyncpa [#allocation10], 0
    %13 = vsyncpa [#allocation5], 0
    // Predicated region
    $region2: #{_rnn_seq_call.1} parent=1 // pred_check
      _
    $region3: #{_rnn_seq_call.1} parent=1 // pred_check_branch
      %15 = sbr.rel (0) target = $region5
    $region4: #{_rnn_seq_call.1} parent=1 // pred_region
      %s17 = ssub.s32 128, 128
      %18 = vsyncadd [#allocation4], %s17
      %s20 = sshll.u32 [#allocation3], 4
      %s21 = int_to_ptr.vmem [resolvable:$true] %s20
      %23 = dma.hbm_to_vmem [thread:$0]  %s0, 128, %s21, [#allocation4]
    $region5: #{_rnn_seq_call.1} parent=1 // pred_fallthru
      _
    // Predicated region
    $region6: #{_rnn_seq_call.1} parent=1 // pred_check
      _
    $region7: #{_rnn_seq_call.1} parent=1 // pred_check_branch
      %25 = sbr.rel (0) target = $region9
    $region8: #{_rnn_seq_call.1} parent=1 // pred_region
      %s27 = ssub.s32 128, 128
      %28 = vsyncadd [#allocation7], %s27
      %s30 = sshll.u32 [#allocation6], 4
      %s31 = int_to_ptr.vmem [resolvable:$true] %s30
      %33 = dma.hbm_to_vmem [thread:$0]  %s1, 128, %s31, [#allocation7]
    $region9: #{_rnn_seq_call.1} parent=1 // pred_fallthru
      _
    // Predicated region
    $region10: #{_rnn_seq_call.1} parent=1 // pred_check
      _
    $region11: #{_rnn_seq_call.1} parent=1 // pred_check_branch
      %35 = sbr.rel (0) target = $region13
    $region12: #{_rnn_seq_call.1} parent=1 // pred_region
      %s37 = ssub.s32 512, 512
      %38 = vsyncadd [#allocation7], %s37
      %s39 = sshll.u32 [#allocation8], 4
      %s40 = int_to_ptr.vmem [resolvable:$true] %s39
      %45 = dma.hbm_to_vmem [thread:$0]  %s2, 512, %s40, [#allocation7], 128, 128, 8
    $region13: #{_rnn_seq_call.1} parent=1 // pred_fallthru
      _
    // Predicated region
    $region14: #{_rnn_seq_call.1} parent=1 // pred_check
      _
    $region15: #{_rnn_seq_call.1} parent=1 // pred_check_branch
      %47 = sbr.rel (0) target = $region17
    $region16: #{_rnn_seq_call.1} parent=1 // pred_region
      %s49 = ssub.s32 2048, 2048
      %50 = vsyncadd [#allocation10], %s49
      %s51 = sshll.u32 [#allocation9], 4
      %s52 = int_to_ptr.vmem [resolvable:$true] %s51
      %57 = dma.hbm_to_vmem [thread:$0]  %s3, 2048, %s52, [#allocation10], 128, 128, 8
    $region17: #{_rnn_seq_call.1} parent=1 // pred_fallthru
      _
    // Predicated region
    $region18: #{_rnn_seq_call.1} parent=1 // pred_check
      _
    $region19: #{_rnn_seq_call.1} parent=1 // pred_check_branch
      %59 = sbr.rel (0) target = $region21
    $region20: #{_rnn_seq_call.1} parent=1 // pred_region
      _
    $region21: #{_rnn_seq_call.1} parent=1 // pred_fallthru
      _
    // Predicated region
    $region22: #{_rnn_seq_call.1} parent=1 // pred_check
      _
    $region23: #{_rnn_seq_call.1} parent=1 // pred_check_branch
      %61 = sbr.rel (0) target = $region25
    $region24: #{_rnn_seq_call.1} parent=1 // pred_region
      %62 = dma.done [#allocation4], 128
    $region25: #{_rnn_seq_call.1} parent=1 // pred_fallthru
      _
    // Predicated region
    $region26: #{_rnn_seq_call.1} parent=1 // pred_check
      _
    $region27: #{_rnn_seq_call.1} parent=1 // pred_check_branch
      %64 = sbr.rel (0) target = $region29
    $region28: #{_rnn_seq_call.1} parent=1 // pred_region
      %65 = dma.done [#allocation7], 128
    $region29: #{_rnn_seq_call.1} parent=1 // pred_fallthru
      _
    // Predicated region
    $region30: #{_rnn_seq_call.1} parent=1 // pred_check
      _
    $region31: #{_rnn_seq_call.1} parent=1 // pred_check_branch
      %67 = sbr.rel (0) target = $region33
    $region32: #{_rnn_seq_call.1} parent=1 // pred_region
      %68 = dma.done [#allocation7], 512
    $region33: #{_rnn_seq_call.1} parent=1 // pred_fallthru
      _
    // Predicated region
    $region34: #{_rnn_seq_call.1} parent=1 // pred_check
      _
    $region35: #{_rnn_seq_call.1} parent=1 // pred_check_branch
      %70 = sbr.rel (0) target = $region37
    $region36: #{_rnn_seq_call.1} parent=1 // pred_region
      %71 = dma.done [#allocation10], 2048
    $region37: #{_rnn_seq_call.1} parent=1 // pred_fallthru
      _
    %p72 = scmp.eq.s32.totalorder 0, 0
    // Predicated region
    $region38: #{_rnn_seq_call.1} parent=1 // pred_check
      %p73 = pneg %p72
    $region39: #{_rnn_seq_call.1} parent=1 // pred_check_branch
      %75 = sbr.rel (%p73) target = $region41
    $region40: #{_rnn_seq_call.1} parent=1 // pred_region
      %v76 = vld [vmem:[#allocation6] sm:$0xff]
      %77 = vst [vmem:[#allocation2] sm:$0xff] %v76
    $region41: #{_rnn_seq_call.1} parent=1 // pred_fallthru
      _
    %v78 = vld [vmem:[#allocation3] sm:$0xff]
    %v79 = vld [vmem:[#allocation8] sm:$0xff]
    %v80 = vld [vmem:[#allocation8 + $0x8] sm:$0xff]
    %v81 = vld [vmem:[#allocation8 + $0x10] sm:$0xff]
    %v82 = vld [vmem:[#allocation8 + $0x18] sm:$0xff]
    %v83 = vld [vmem:[%s4] sm:$0x1]
    %v85 = vlaneseq
    %v86 = vshrl.u32 %v85, 7
    %v87 = vsub.s32 0, %v86
    %v88 = vrot.slane %v83, %v87
    %vm90 = vcmask 261120
    %v92 = vsel %vm90, %v78, 0
    %94 = vmatprep.subr.mxu0 0.0
    %95 = vmatpush1.msra.mxu0 %v79
    %96 = vmatprep.subr.mxu0 0.0
    %97 = vmatpush1.msra.mxu0 %v80
    %98 = vmatprep.subr.mxu0 0.0
    %99 = vmatpush1.msra.mxu0 %v81
    %100 = vmatprep.subr.mxu0 0.0
    %101 = vmatpush1.msra.mxu0 %v82
    %102 = vmatprep.subr.mxu0 0.0
    %103 = vmatpush1.msra.mxu0 0.0
    %104 = vmatprep.subr.mxu0 0.0
    %105 = vmatpush1.msra.mxu0 0.0
    %106 = vmatprep.subr.mxu0 0.0
    %107 = vmatpush1.msra.mxu0 0.0
    %108 = vmatprep.subr.mxu0 0.0
    %109 = vmatpush1.msra.mxu0 0.0
    %110 = vmatprep.subr.mxu0 0.0
    %111 = vmatpush1.msra.mxu0 0.0
    %112 = vmatprep.subr.mxu0 0.0
    %113 = vmatpush1.msra.mxu0 0.0
    %114 = vmatprep.subr.mxu0 0.0
    %115 = vmatpush1.msra.mxu0 0.0
    %116 = vmatprep.subr.mxu0 0.0
    %117 = vmatpush1.msra.mxu0 0.0
    %118 = vmatprep.subr.mxu0 0.0
    %119 = vmatpush1.msra.mxu0 0.0
    %120 = vmatprep.subr.mxu0 0.0
    %121 = vmatpush1.msra.mxu0 0.0
    %122 = vmatprep.subr.mxu0 0.0
    %123 = vmatpush1.msra.mxu0 0.0
    %124 = vmatprep.subr.mxu0 0.0
    %125 = vmatpush1.msra.mxu0 0.0
    %126 = vmatprep.subr.mxu0 0.0
    %127 = vmatpush1.msra.mxu0 0.0
    %128 = vmatprep.subr.mxu0 0.0
    %129 = vmatpush1.msra.mxu0 0.0
    %130 = vmatprep.subr.mxu0 0.0
    %131 = vmatpush1.msra.mxu0 0.0
    %132 = vmatprep.subr.mxu0 0.0
    %133 = vmatpush1.msra.mxu0 0.0
    %134 = vmatprep.subr.mxu0 0.0
    %135 = vmatpush1.msra.mxu0 0.0
    %136 = vmatprep.subr.mxu0 0.0
    %137 = vmatpush1.msra.mxu0 0.0
    %138 = vmatprep.subr.mxu0 0.0
    %139 = vmatpush1.msra.mxu0 0.0
    %140 = vmatprep.subr.mxu0 0.0
    %141 = vmatpush1.msra.mxu0 0.0
    %142 = vmatprep.subr.mxu0 0.0
    %143 = vmatpush1.msra.mxu0 0.0
    %144 = vmatprep.subr.mxu0 0.0
    %145 = vmatpush1.msra.mxu0 0.0
    %146 = vmatprep.subr.mxu0 0.0
    %147 = vmatpush1.msra.mxu0 0.0
    %148 = vmatprep.subr.mxu0 0.0
    %149 = vmatpush1.msra.mxu0 0.0
    %150 = vmatprep.subr.mxu0 0.0
    %151 = vmatpush1.msra.mxu0 0.0
    %152 = vmatprep.subr.mxu0 0.0
    %153 = vmatpush1.msra.mxu0 0.0
    %154 = vmatprep.subr.mxu0 0.0
    %155 = vmatpush1.msra.mxu0 0.0
    %156 = vmatprep.subr.mxu0 0.0
    %157 = vmatpush1.msra.mxu0 0.0
    %158 = vmatprep.mubr.f32.mxu0 0.0
    %159 = vmatmul.mubr.f32.gmra.mrb[0].mxu0 %v92
    %v160 = vpop.f32.mrb[0].mxu0
    %v161 = vadd.f32 %v88, %v160
    %v162 = vpop.f32.mrb[0].mxu0
    %163 = vdwg.mxu0
    %164 = vst [vmem:[#allocation11] sm:$0xff] %v161
    %v165 = vlaneseq
    %v166 = vand.u32 %v165, 127
    %vm167 = vcmp.ge.s32.totalorder %v166, 32
    %vm168 = vcmp.lt.s32.totalorder %v166, 48
    %vm169 = vmand %vm167, %vm168
    %v170 = vld [vmem:[#allocation2] sm:$0xff]
    %v171 = vld [vmem:[#allocation11] sm:$0xff]
    %v172 = vld [vmem:[#allocation9] sm:$0xff]
    %v173 = vld [vmem:[#allocation9 + $0x8] sm:$0xff]
    %v174 = vld [vmem:[#allocation9 + $0x10] sm:$0xff]
    %v175 = vld [vmem:[#allocation9 + $0x18] sm:$0xff]
    %v176 = vld [vmem:[#allocation9 + $0x20] sm:$0xff]
    %v177 = vld [vmem:[#allocation9 + $0x28] sm:$0xff]
    %v178 = vld [vmem:[#allocation9 + $0x30] sm:$0xff]
    %v179 = vld [vmem:[#allocation9 + $0x38] sm:$0xff]
    %v180 = vld [vmem:[#allocation9 + $0x40] sm:$0xff]
    %v181 = vld [vmem:[#allocation9 + $0x48] sm:$0xff]
    %v182 = vld [vmem:[#allocation9 + $0x50] sm:$0xff]
    %v183 = vld [vmem:[#allocation9 + $0x58] sm:$0xff]
    %v184 = vld [vmem:[#allocation9 + $0x60] sm:$0xff]
    %v185 = vld [vmem:[#allocation9 + $0x68] sm:$0xff]
    %v186 = vld [vmem:[#allocation9 + $0x70] sm:$0xff]
    %v187 = vld [vmem:[#allocation9 + $0x78] sm:$0xff]
    %188 = vmatprep.subr.mxu0 0.0
    %189 = vmatpush1.msra.mxu0 %v172
    %190 = vmatprep.subr.mxu0 0.0
    %191 = vmatpush1.msra.mxu0 %v173
    %192 = vmatprep.subr.mxu0 0.0
    %193 = vmatpush1.msra.mxu0 %v174
    %194 = vmatprep.subr.mxu0 0.0
    %195 = vmatpush1.msra.mxu0 %v175
    %196 = vmatprep.subr.mxu0 0.0
    %197 = vmatpush1.msra.mxu0 %v176
    %198 = vmatprep.subr.mxu0 0.0
    %199 = vmatpush1.msra.mxu0 %v177
    %200 = vmatprep.subr.mxu0 0.0
    %201 = vmatpush1.msra.mxu0 %v178
    %202 = vmatprep.subr.mxu0 0.0
    %203 = vmatpush1.msra.mxu0 %v179
    %204 = vmatprep.subr.mxu0 0.0
    %205 = vmatpush1.msra.mxu0 %v180
    %206 = vmatprep.subr.mxu0 0.0
    %207 = vmatpush1.msra.mxu0 %v181
    %208 = vmatprep.subr.mxu0 0.0
    %209 = vmatpush1.msra.mxu0 %v182
    %210 = vmatprep.subr.mxu0 0.0
    %211 = vmatpush1.msra.mxu0 %v183
    %212 = vmatprep.subr.mxu0 0.0
    %213 = vmatpush1.msra.mxu0 %v184
    %214 = vmatprep.subr.mxu0 0.0
    %215 = vmatpush1.msra.mxu0 %v185
    %216 = vmatprep.subr.mxu0 0.0
    %217 = vmatpush1.msra.mxu0 %v186
    %218 = vmatprep.subr.mxu0 0.0
    %219 = vmatpush1.msra.mxu0 %v187
    %220 = vmatprep.subr.mxu0 0.0
    %221 = vmatpush1.msra.mxu0 0.0
    %222 = vmatprep.subr.mxu0 0.0
    %223 = vmatpush1.msra.mxu0 0.0
    %224 = vmatprep.subr.mxu0 0.0
    %225 = vmatpush1.msra.mxu0 0.0
    %226 = vmatprep.subr.mxu0 0.0
    %227 = vmatpush1.msra.mxu0 0.0
    %228 = vmatprep.subr.mxu0 0.0
    %229 = vmatpush1.msra.mxu0 0.0
    %230 = vmatprep.subr.mxu0 0.0
    %231 = vmatpush1.msra.mxu0 0.0
    %232 = vmatprep.subr.mxu0 0.0
    %233 = vmatpush1.msra.mxu0 0.0
    %234 = vmatprep.subr.mxu0 0.0
    %235 = vmatpush1.msra.mxu0 0.0
    %236 = vmatprep.subr.mxu0 0.0
    %237 = vmatpush1.msra.mxu0 0.0
    %238 = vmatprep.subr.mxu0 0.0
    %239 = vmatpush1.msra.mxu0 0.0
    %240 = vmatprep.subr.mxu0 0.0
    %241 = vmatpush1.msra.mxu0 0.0
    %242 = vmatprep.subr.mxu0 0.0
    %243 = vmatpush1.msra.mxu0 0.0
    %244 = vmatprep.subr.mxu0 0.0
    %245 = vmatpush1.msra.mxu0 0.0
    %246 = vmatprep.subr.mxu0 0.0
    %247 = vmatpush1.msra.mxu0 0.0
    %248 = vmatprep.subr.mxu0 0.0
    %249 = vmatpush1.msra.mxu0 0.0
    %250 = vmatprep.subr.mxu0 0.0
    %251 = vmatpush1.msra.mxu0 0.0
    %252 = vmatprep.mubr.f32.mxu0 0.0
    %253 = vmatmul.mubr.f32.gmra.mrb[0].mxu0 %v170
    %v254 = vpop.f32.mrb[0].mxu0
    %v255 = vadd.f32 0.0, %v254
    %v256 = vpop.f32.mrb[0].mxu0
    %257 = vdwg.mxu0
    %v258 = vadd.f32 %v171, %v255
    %v259 = vxor.u32 %v258, 2147483648
    %v260 = vmul.f32 %v259, 1.442695
    %v261 = vpow.pop %v260
    %v262 = vadd.f32 %v261, 1.0
    %v263 = vrcp.pop %v262
    %v264 = vmul.f32 1.0, %v263
    %v265 = vsel %vm169, %v264, %v258
    %266 = vst [vmem:[#allocation11] sm:$0xff] %v265
    %267 = vst [vmem:[#allocation2] sm:$0xff] %v258
    // Predicated region
    $region42: #{_rnn_seq_call.1} parent=1 // pred_check
      _
    $region43: #{_rnn_seq_call.1} parent=1 // pred_check_branch
      %269 = sbr.rel (0) target = $region45
    $region44: #{_rnn_seq_call.1} parent=1 // pred_region
      %s271 = ssub.s32 128, 128
      %272 = vsyncadd [#allocation5], %s271
      %s274 = sshll.u32 [#allocation11], 4
      %s275 = int_to_ptr.vmem [resolvable:$true] %s274
      %277 = dma.vmem_to_hbm [thread:$0]  %s275, 128, %s5, [#allocation5]
    $region45: #{_rnn_seq_call.1} parent=1 // pred_fallthru
      _
    // Predicated region
    $region46: #{_rnn_seq_call.1} parent=1 // pred_check
      _
    $region47: #{_rnn_seq_call.1} parent=1 // pred_check_branch
      %279 = sbr.rel (0) target = $region49
    $region48: #{_rnn_seq_call.1} parent=1 // pred_region
      %280 = dma.done [#allocation5], 128
    $region49: #{_rnn_seq_call.1} parent=1 // pred_fallthru
      _
    %281 = vsyncpa [#allocation4], 1
    %282 = vsyncpa [#allocation7], 1
    %283 = vsyncpa [#allocation10], 1
    %284 = vsyncpa [#allocation5], 1

</llo_original>
